<compile_context>
chip_gen: v7x
topology: tpu7x:2x2x1
jax: 0.10.0
libtpu: 0.0.40
codegen_flags: <defaults>
</compile_context>

<pallas_src>
import jax
import jax.numpy as jnp
from jax import lax
from jax.experimental import pallas as pl
from jax.experimental.pallas import tpu as pltpu

EPS = 1e-6
LANE = 128
TB_CAP = 8          # max batch rows per block


def _cdiv(a, b):
    return (a + b - 1) // b


def _device_tuning():
    """Return (per-array tile byte cap, vmem_limit_bytes) per TPU generation."""
    try:
        kind = jax.devices()[0].device_kind.lower()
    except Exception:
        kind = ""
    if ("v5 lite" in kind) or ("v5e" in kind) or ("v5lite" in kind):
        return 1 << 20, 32 << 20          # v5e: ~1 MiB tiles already at roofline
    if "7" in kind:                       # v7x: 64 MiB VMEM, 3.2 TB/s HBM
        return 4 << 20, 48 << 20
    return 2 << 20, 48 << 20              # v6e and other 128-MiB-VMEM chips


# --------------------------------------------------------------------------
# Kernel 1: per-row statistics (mean, 1/std) via a 2-phase tiled reduction.
# --------------------------------------------------------------------------
def _make_stats_kernel(R0, TR, ragged):
    def _stats_kernel(d_ref, g_ref, m_ref,
                      mean_d_ref, mean_g_ref, inv_sd_ref, inv_sg_ref,
                      invn_ref):
        p = pl.program_id(1)
        n = pl.program_id(2)
        last_n = pl.num_programs(2) - 1

        d = d_ref[...].astype(jnp.float32)
        g = g_ref[...].astype(jnp.float32)
        m = m_ref[...].astype(jnp.float32)
        if ragged:
            # Ragged N-tile: out-of-bounds rows contain garbage (possibly NaN).
            # Zero them with select (NaN-safe), not multiply.
            row = lax.broadcasted_iota(jnp.int32, d.shape, 1)
            inb = (n * TR + row) < R0
            m = jnp.where(inb, m, 0.0)
            d = jnp.where(inb, d, 0.0)
            g = jnp.where(inb, g, 0.0)

        @pl.when((p == 0) & (n == 0))
        def _init():
            invn_ref[...] = jnp.zeros_like(invn_ref)
            mean_d_ref[...] = jnp.zeros_like(mean_d_ref)
            mean_g_ref[...] = jnp.zeros_like(mean_g_ref)

        @pl.when(p == 0)
        def _accum_sums():
            invn_ref[...] += jnp.sum(m, axis=(1, 2), keepdims=True)
            mean_d_ref[...] += jnp.sum(d * m, axis=(1, 2), keepdims=True)
            mean_g_ref[...] += jnp.sum(g * m, axis=(1, 2), keepdims=True)

        @pl.when((p == 0) & (n == last_n))
        def _finalize_means():
            cnt = invn_ref[...]
            cnt = jnp.where(cnt == 0.0, EPS, cnt)
            inv_n = 1.0 / cnt                  # one divide per batch row
            invn_ref[...] = inv_n              # keep 1/n for the std finalize
            mean_d_ref[...] = mean_d_ref[...] * inv_n
            mean_g_ref[...] = mean_g_ref[...] * inv_n
            inv_sd_ref[...] = jnp.zeros_like(inv_sd_ref)
            inv_sg_ref[...] = jnp.zeros_like(inv_sg_ref)

        @pl.when(p == 1)
        def _accum_absdev():
            inv_sd_ref[...] += jnp.sum(jnp.abs((d - mean_d_ref[...]) * m),
                                       axis=(1, 2), keepdims=True)
            inv_sg_ref[...] += jnp.sum(jnp.abs((g - mean_g_ref[...]) * m),
                                       axis=(1, 2), keepdims=True)

        @pl.when((p == 1) & (n == last_n))
        def _finalize_inv_std():
            inv_n = invn_ref[...]
            inv_sd_ref[...] = 1.0 / (inv_sd_ref[...] * inv_n + EPS)
            inv_sg_ref[...] = 1.0 / (inv_sg_ref[...] * inv_n + EPS)

    return _stats_kernel


# --------------------------------------------------------------------------
# Kernel 2: streaming apply  out = (x - mean) * inv_std   (multiply, not divide)
# --------------------------------------------------------------------------
def _apply_kernel(d_ref, g_ref, mean_d_ref, mean_g_ref, inv_sd_ref, inv_sg_ref,
                  sta_d_ref, sta_g_ref):
    d = d_ref[...].astype(jnp.float32)
    g = g_ref[...].astype(jnp.float32)
    sta_d_ref[...] = ((d - mean_d_ref[...]) * inv_sd_ref[...]).astype(sta_d_ref.dtype)
    sta_g_ref[...] = ((g - mean_g_ref[...]) * inv_sg_ref[...]).astype(sta_g_ref.dtype)


def standardize_data(depth, gt, mask_hole):
    """depth, gt, mask_hole: [B, C, H, W] -> (sta_depth, sta_gt), same shape."""
    B, C, H, W = depth.shape
    N = C * H * W
    R0 = _cdiv(N, LANE)                 # rows of 128 lanes
    NPAD = R0 * LANE

    tile_cap_bytes, vmem_limit = _device_tuning()

    # --- batch tiling: expose >= 2 parallel batch blocks when B >= 2 so a
    #     dual-TensorCore chip (v7x) keeps both cores busy on the stats pass ---
    nb = _cdiv(B, TB_CAP)
    if B >= 2:
        nb = max(nb, 2)
    TB = _cdiv(B, nb)
    NB = _cdiv(B, TB)

    # --- N tiling: as large as the per-array byte cap allows; multiple of 32
    #     (friendly to f32 / bf16 / int8 sublane packing) ---
    tr_cap = max(32, tile_cap_bytes // (TB * LANE * 4))
    if R0 <= tr_cap:
        TR = R0                          # full extent -> no ragged N-tile
    else:
        TR = max(32, (tr_cap // 32) * 32)
    NT = _cdiv(R0, TR)
    ragged = (R0 % TR) != 0

    def prep(x, dt):
        x2 = x.reshape(B, N).astype(dt)
        if NPAD != N:
            # Fallback only when C*H*W is not a multiple of 128; the common
            # path performs no pad / slice copies at all (reshapes are free).
            x2 = jnp.pad(x2, ((0, 0), (0, NPAD - N)))
        return x2.reshape(B, R0, LANE)

    d3 = prep(depth, depth.dtype)
    g3 = prep(gt, gt.dtype)
    # Binary hole mask -> bf16 (exact for 0/1), halving its HBM traffic; the
    # stats kernel streams it twice so this is a ~10% end-to-end traffic cut.
    m3 = prep(mask_hole, jnp.bfloat16)

    d_item = depth.dtype.itemsize
    g_item = gt.dtype.itemsize

    # ---------------- pass 1+2: per-row stats (pipelined, tiled) ----------------
    data_spec3 = pl.BlockSpec((TB, TR, LANE), lambda b, p, n: (b, n, 0))
    stat_spec3 = pl.BlockSpec((TB, 1, 1), lambda b, p, n: (b, 0, 0))
    stat_shape = jax.ShapeDtypeStruct((B, 1, 1), jnp.float32)

    stats_cost = pl.CostEstimate(
        flops=int(14 * B * NPAD),
        transcendentals=0,
        bytes_accessed=int(2 * B * NPAD * (d_item + g_item + 2)),
    )
    mean_d, mean_g, inv_sd, inv_sg = pl.pallas_call(
        _make_stats_kernel(R0, TR, ragged),
        grid=(NB, 2, NT),
        in_specs=(data_spec3, data_spec3, data_spec3),
        out_specs=(stat_spec3,) * 4,
        out_shape=(stat_shape,) * 4,
        scratch_shapes=[pltpu.VMEM((TB, 1, 1), jnp.float32)],
        compiler_params=pltpu.CompilerParams(
            dimension_semantics=("parallel", "arbitrary", "arbitrary"),
            vmem_limit_bytes=vmem_limit,
        ),
        cost_estimate=stats_cost,
    )(d3, g3, m3)

    # ---------------- pass 3: streaming apply ----------------
    data_spec2 = pl.BlockSpec((TB, TR, LANE), lambda b, n: (b, n, 0))
    stat_spec2 = pl.BlockSpec((TB, 1, 1), lambda b, n: (b, 0, 0))
    apply_cost = pl.CostEstimate(
        flops=int(4 * B * NPAD),
        transcendentals=0,
        bytes_accessed=int(2 * B * NPAD * (d_item + g_item)),
    )
    sta_d3, sta_g3 = pl.pallas_call(
        _apply_kernel,
        grid=(NB, NT),
        in_specs=(data_spec2, data_spec2,
                  stat_spec2, stat_spec2, stat_spec2, stat_spec2),
        out_specs=(data_spec2, data_spec2),
        out_shape=(jax.ShapeDtypeStruct((B, R0, LANE), depth.dtype),
                   jax.ShapeDtypeStruct((B, R0, LANE), gt.dtype)),
        compiler_params=pltpu.CompilerParams(
            dimension_semantics=("parallel", "parallel"),
            vmem_limit_bytes=vmem_limit,
        ),
        cost_estimate=apply_cost,
    )(d3, g3, mean_d, mean_g, inv_sd, inv_sg)

    def unprep(x3):
        x2 = x3.reshape(B, NPAD)
        if NPAD != N:
            x2 = x2[:, :N]
        return x2.reshape(B, C, H, W)

    return unprep(sta_d3), unprep(sta_g3)


def _reference(depth, gt, mask, eps=EPS):
    # Pure-JAX reference mirroring the PyTorch module.
    def stats(x):
        n = jnp.sum(mask, axis=(1, 2, 3))
        n = jnp.where(n == 0, eps, n)
        mean = (jnp.sum(x * mask, axis=(1, 2, 3)) / n).reshape(-1, 1, 1, 1)
        std = jnp.sum(jnp.abs((x - mean) * mask), axis=(1, 2, 3)) / n
        return mean, std.reshape(-1, 1, 1, 1) + eps

    t_d, s_d = stats(depth)
    t_g, s_g = stats(gt)
    return (depth - t_d) / s_d, (gt - t_g) / s_g


if __name__ == "__main__":
    B, C, H, W = 2, 4, 16, 16
    key = jax.random.PRNGKey(0)
    k1, k2, k3 = jax.random.split(key, 3)
    depth = jax.random.uniform(k1, (B, C, H, W), jnp.float32, 0.1, 10.0)
    gt = jax.random.uniform(k2, (B, C, H, W), jnp.float32, 0.1, 10.0)
    mask_hole = (jax.random.uniform(k3, (B, C, H, W)) > 0.3).astype(jnp.float32)

    sta_depth, sta_gt = standardize_data(depth, gt, mask_hole)
    jax.block_until_ready((sta_depth, sta_gt))

    ref_d, ref_g = _reference(depth, gt, mask_hole)
    assert jnp.allclose(sta_depth, ref_d, atol=1e-4, rtol=1e-4), \
        float(jnp.max(jnp.abs(sta_depth - ref_d)))
    assert jnp.allclose(sta_gt, ref_g, atol=1e-4, rtol=1e-4), \
        float(jnp.max(jnp.abs(sta_gt - ref_g)))

    print("KERNEL_OK")
</pallas_src>

<mosaic_0001>
module attributes {stable_mosaic.version = 11 : i64} {
  func.func @_stats_kernel(%arg0: i32, %arg1: i32, %arg2: i32, %arg3: memref<1x8x128xf32, #tpu.memory_space<vmem>>, %arg4: memref<1x8x128xf32, #tpu.memory_space<vmem>>, %arg5: memref<1x8x128xbf16, #tpu.memory_space<vmem>>, %arg6: memref<1x1x1xf32, #tpu.memory_space<vmem>>, %arg7: memref<1x1x1xf32, #tpu.memory_space<vmem>>, %arg8: memref<1x1x1xf32, #tpu.memory_space<vmem>>, %arg9: memref<1x1x1xf32, #tpu.memory_space<vmem>>, %arg10: memref<1x1x1xf32, #tpu.memory_space<vmem>>) attributes {dimension_semantics = [#tpu.dimension_semantics<parallel>, #tpu.dimension_semantics<arbitrary>, #tpu.dimension_semantics<arbitrary>], iteration_bounds = array<i64: 2, 2, 1>, scalar_prefetch = 0 : i64, scratch_operands = 1 : i64, tpu.core_type = #tpu.core_type<tc>, window_params = [{transform_indices = @transform_0, window_bounds = array<i64: 1, 8, 128>}, {transform_indices = @transform_1, window_bounds = array<i64: 1, 8, 128>}, {transform_indices = @transform_2, window_bounds = array<i64: 1, 8, 128>}, {transform_indices = @transform_3, window_bounds = array<i64: 1, 1, 1>}, {transform_indices = @transform_4, window_bounds = array<i64: 1, 1, 1>}, {transform_indices = @transform_5, window_bounds = array<i64: 1, 1, 1>}, {transform_indices = @transform_6, window_bounds = array<i64: 1, 1, 1>}]} {
    %c0 = arith.constant 0 : index
    %c0_0 = arith.constant 0 : index
    %c0_1 = arith.constant 0 : index
    %0 = vector.load %arg3[%c0, %c0_0, %c0_1] : memref<1x8x128xf32, #tpu.memory_space<vmem>>, vector<1x8x128xf32>
    %c0_2 = arith.constant 0 : index
    %c0_3 = arith.constant 0 : index
    %c0_4 = arith.constant 0 : index
    %1 = vector.load %arg4[%c0_2, %c0_3, %c0_4] : memref<1x8x128xf32, #tpu.memory_space<vmem>>, vector<1x8x128xf32>
    %c0_5 = arith.constant 0 : index
    %c0_6 = arith.constant 0 : index
    %c0_7 = arith.constant 0 : index
    %2 = vector.load %arg5[%c0_5, %c0_6, %c0_7] : memref<1x8x128xbf16, #tpu.memory_space<vmem>>, vector<1x8x128xbf16>
    %3 = arith.extf %2 : vector<1x8x128xbf16> to vector<1x8x128xf32>
    %c0_i32 = arith.constant 0 : i32
    %4 = arith.cmpi eq, %arg1, %c0_i32 : i32
    %c0_i32_8 = arith.constant 0 : i32
    %5 = arith.cmpi eq, %arg2, %c0_i32_8 : i32
    %6 = arith.andi %4, %5 : i1
    %7 = arith.extui %6 : i1 to i32
    %c0_i32_9 = arith.constant 0 : i32
    %8 = arith.cmpi ne, %7, %c0_i32_9 : i32
    scf.if %8 {
      %cst = arith.constant 0.000000e+00 : f32
      %25 = vector.broadcast %cst : f32 to vector<1x1x1xf32>
      %c0_19 = arith.constant 0 : index
      %c0_20 = arith.constant 0 : index
      %c0_21 = arith.constant 0 : index
      %26 = vector.load %arg10[%c0_19, %c0_20, %c0_21] : memref<1x1x1xf32, #tpu.memory_space<vmem>>, vector<1x1x1xf32>
      tpu.vector_store %arg10[%c0_19, %c0_20, %c0_21], %25 {strides = array<i32>} : memref<1x1x1xf32, #tpu.memory_space<vmem>>, vector<1x1x1xf32>,
      %cst_22 = arith.constant 0.000000e+00 : f32
      %27 = vector.broadcast %cst_22 : f32 to vector<1x1x1xf32>
      %c0_23 = arith.constant 0 : index
      %c0_24 = arith.constant 0 : index
      %c0_25 = arith.constant 0 : index
      %28 = vector.load %arg6[%c0_23, %c0_24, %c0_25] : memref<1x1x1xf32, #tpu.memory_space<vmem>>, vector<1x1x1xf32>
      tpu.vector_store %arg6[%c0_23, %c0_24, %c0_25], %27 {strides = array<i32>} : memref<1x1x1xf32, #tpu.memory_space<vmem>>, vector<1x1x1xf32>,
      %cst_26 = arith.constant 0.000000e+00 : f32
      %29 = vector.broadcast %cst_26 : f32 to vector<1x1x1xf32>
      %c0_27 = arith.constant 0 : index
      %c0_28 = arith.constant 0 : index
      %c0_29 = arith.constant 0 : index
      %30 = vector.load %arg7[%c0_27, %c0_28, %c0_29] : memref<1x1x1xf32, #tpu.memory_space<vmem>>, vector<1x1x1xf32>
      tpu.vector_store %arg7[%c0_27, %c0_28, %c0_29], %29 {strides = array<i32>} : memref<1x1x1xf32, #tpu.memory_space<vmem>>, vector<1x1x1xf32>,
    } else {
    }
    %c0_i32_10 = arith.constant 0 : i32
    %9 = arith.cmpi eq, %arg1, %c0_i32_10 : i32
    %10 = arith.extui %9 : i1 to i32
    %c0_i32_11 = arith.constant 0 : i32
    %11 = arith.cmpi ne, %10, %c0_i32_11 : i32
    scf.if %11 {
      %c0_19 = arith.constant 0 : index
      %c0_20 = arith.constant 0 : index
      %c0_21 = arith.constant 0 : index
      %25 = vector.load %arg10[%c0_19, %c0_20, %c0_21] : memref<1x1x1xf32, #tpu.memory_space<vmem>>, vector<1x1x1xf32>
      %cst = arith.constant dense<0.000000e+00> : vector<1xf32>
      %26 = vector.multi_reduction <add>, %3, %cst [1, 2] : vector<1x8x128xf32> to vector<1xf32>
      %27 = vector.shape_cast %26 : vector<1xf32> to vector<1x1x1xf32>
      %28 = arith.addf %25, %27 : vector<1x1x1xf32>
      %c0_22 = arith.constant 0 : index
      %c0_23 = arith.constant 0 : index
      %c0_24 = arith.constant 0 : index
      %29 = vector.load %arg10[%c0_22, %c0_23, %c0_24] : memref<1x1x1xf32, #tpu.memory_space<vmem>>, vector<1x1x1xf32>
      tpu.vector_store %arg10[%c0_22, %c0_23, %c0_24], %28 {strides = array<i32>} : memref<1x1x1xf32, #tpu.memory_space<vmem>>, vector<1x1x1xf32>,
      %c0_25 = arith.constant 0 : index
      %c0_26 = arith.constant 0 : index
      %c0_27 = arith.constant 0 : index
      %30 = vector.load %arg6[%c0_25, %c0_26, %c0_27] : memref<1x1x1xf32, #tpu.memory_space<vmem>>, vector<1x1x1xf32>
      %31 = arith.mulf %0, %3 : vector<1x8x128xf32>
      %cst_28 = arith.constant dense<0.000000e+00> : vector<1xf32>
      %32 = vector.multi_reduction <add>, %31, %cst_28 [1, 2] : vector<1x8x128xf32> to vector<1xf32>
      %33 = vector.shape_cast %32 : vector<1xf32> to vector<1x1x1xf32>
      %34 = arith.addf %30, %33 : vector<1x1x1xf32>
      %c0_29 = arith.constant 0 : index
      %c0_30 = arith.constant 0 : index
      %c0_31 = arith.constant 0 : index
      %35 = vector.load %arg6[%c0_29, %c0_30, %c0_31] : memref<1x1x1xf32, #tpu.memory_space<vmem>>, vector<1x1x1xf32>
      tpu.vector_store %arg6[%c0_29, %c0_30, %c0_31], %34 {strides = array<i32>} : memref<1x1x1xf32, #tpu.memory_space<vmem>>, vector<1x1x1xf32>,
      %c0_32 = arith.constant 0 : index
      %c0_33 = arith.constant 0 : index
      %c0_34 = arith.constant 0 : index
      %36 = vector.load %arg7[%c0_32, %c0_33, %c0_34] : memref<1x1x1xf32, #tpu.memory_space<vmem>>, vector<1x1x1xf32>
      %37 = arith.mulf %1, %3 : vector<1x8x128xf32>
      %cst_35 = arith.constant dense<0.000000e+00> : vector<1xf32>
      %38 = vector.multi_reduction <add>, %37, %cst_35 [1, 2] : vector<1x8x128xf32> to vector<1xf32>
      %39 = vector.shape_cast %38 : vector<1xf32> to vector<1x1x1xf32>
      %40 = arith.addf %36, %39 : vector<1x1x1xf32>
      %c0_36 = arith.constant 0 : index
      %c0_37 = arith.constant 0 : index
      %c0_38 = arith.constant 0 : index
      %41 = vector.load %arg7[%c0_36, %c0_37, %c0_38] : memref<1x1x1xf32, #tpu.memory_space<vmem>>, vector<1x1x1xf32>
      tpu.vector_store %arg7[%c0_36, %c0_37, %c0_38], %40 {strides = array<i32>} : memref<1x1x1xf32, #tpu.memory_space<vmem>>, vector<1x1x1xf32>,
    } else {
    }
    %c0_i32_12 = arith.constant 0 : i32
    %12 = arith.cmpi eq, %arg1, %c0_i32_12 : i32
    %c0_i32_13 = arith.constant 0 : i32
    %13 = arith.cmpi eq, %arg2, %c0_i32_13 : i32
    %14 = arith.andi %12, %13 : i1
    %15 = arith.extui %14 : i1 to i32
    %c0_i32_14 = arith.constant 0 : i32
    %16 = arith.cmpi ne, %15, %c0_i32_14 : i32
    scf.if %16 {
      %c0_19 = arith.constant 0 : index
      %c0_20 = arith.constant 0 : index
      %c0_21 = arith.constant 0 : index
      %25 = vector.load %arg10[%c0_19, %c0_20, %c0_21] : memref<1x1x1xf32, #tpu.memory_space<vmem>>, vector<1x1x1xf32>
      %cst = arith.constant 0.000000e+00 : f32
      %26 = vector.broadcast %cst : f32 to vector<1x1x1xf32>
      %27 = arith.cmpf oeq, %25, %26 : vector<1x1x1xf32>
      %cst_22 = arith.constant 9.99999997E-7 : f32
      %28 = vector.broadcast %cst_22 : f32 to vector<1x1x1xf32>
      %29 = arith.select %27, %28, %25 : vector<1x1x1xi1>, vector<1x1x1xf32>
      %cst_23 = arith.constant 1.000000e+00 : f32
      %30 = vector.broadcast %cst_23 : f32 to vector<1x1x1xf32>
      %31 = arith.divf %30, %29 : vector<1x1x1xf32>
      %c0_24 = arith.constant 0 : index
      %c0_25 = arith.constant 0 : index
      %c0_26 = arith.constant 0 : index
      %32 = vector.load %arg10[%c0_24, %c0_25, %c0_26] : memref<1x1x1xf32, #tpu.memory_space<vmem>>, vector<1x1x1xf32>
      tpu.vector_store %arg10[%c0_24, %c0_25, %c0_26], %31 {strides = array<i32>} : memref<1x1x1xf32, #tpu.memory_space<vmem>>, vector<1x1x1xf32>,
      %c0_27 = arith.constant 0 : index
      %c0_28 = arith.constant 0 : index
      %c0_29 = arith.constant 0 : index
      %33 = vector.load %arg6[%c0_27, %c0_28, %c0_29] : memref<1x1x1xf32, #tpu.memory_space<vmem>>, vector<1x1x1xf32>
      %34 = arith.mulf %33, %31 : vector<1x1x1xf32>
      %c0_30 = arith.constant 0 : index
      %c0_31 = arith.constant 0 : index
      %c0_32 = arith.constant 0 : index
      %35 = vector.load %arg6[%c0_30, %c0_31, %c0_32] : memref<1x1x1xf32, #tpu.memory_space<vmem>>, vector<1x1x1xf32>
      tpu.vector_store %arg6[%c0_30, %c0_31, %c0_32], %34 {strides = array<i32>} : memref<1x1x1xf32, #tpu.memory_space<vmem>>, vector<1x1x1xf32>,
      %c0_33 = arith.constant 0 : index
      %c0_34 = arith.constant 0 : index
      %c0_35 = arith.constant 0 : index
      %36 = vector.load %arg7[%c0_33, %c0_34, %c0_35] : memref<1x1x1xf32, #tpu.memory_space<vmem>>, vector<1x1x1xf32>
      %37 = arith.mulf %36, %31 : vector<1x1x1xf32>
      %c0_36 = arith.constant 0 : index
      %c0_37 = arith.constant 0 : index
      %c0_38 = arith.constant 0 : index
      %38 = vector.load %arg7[%c0_36, %c0_37, %c0_38] : memref<1x1x1xf32, #tpu.memory_space<vmem>>, vector<1x1x1xf32>
      tpu.vector_store %arg7[%c0_36, %c0_37, %c0_38], %37 {strides = array<i32>} : memref<1x1x1xf32, #tpu.memory_space<vmem>>, vector<1x1x1xf32>,
      %cst_39 = arith.constant 0.000000e+00 : f32
      %39 = vector.broadcast %cst_39 : f32 to vector<1x1x1xf32>
      %c0_40 = arith.constant 0 : index
      %c0_41 = arith.constant 0 : index
      %c0_42 = arith.constant 0 : index
      %40 = vector.load %arg8[%c0_40, %c0_41, %c0_42] : memref<1x1x1xf32, #tpu.memory_space<vmem>>, vector<1x1x1xf32>
      tpu.vector_store %arg8[%c0_40, %c0_41, %c0_42], %39 {strides = array<i32>} : memref<1x1x1xf32, #tpu.memory_space<vmem>>, vector<1x1x1xf32>,
      %cst_43 = arith.constant 0.000000e+00 : f32
      %41 = vector.broadcast %cst_43 : f32 to vector<1x1x1xf32>
      %c0_44 = arith.constant 0 : index
      %c0_45 = arith.constant 0 : index
      %c0_46 = arith.constant 0 : index
      %42 = vector.load %arg9[%c0_44, %c0_45, %c0_46] : memref<1x1x1xf32, #tpu.memory_space<vmem>>, vector<1x1x1xf32>
      tpu.vector_store %arg9[%c0_44, %c0_45, %c0_46], %41 {strides = array<i32>} : memref<1x1x1xf32, #tpu.memory_space<vmem>>, vector<1x1x1xf32>,
    } else {
    }
    %c1_i32 = arith.constant 1 : i32
    %17 = arith.cmpi eq, %arg1, %c1_i32 : i32
    %18 = arith.extui %17 : i1 to i32
    %c0_i32_15 = arith.constant 0 : i32
    %19 = arith.cmpi ne, %18, %c0_i32_15 : i32
    scf.if %19 {
      %c0_19 = arith.constant 0 : index
      %c0_20 = arith.constant 0 : index
      %c0_21 = arith.constant 0 : index
      %25 = vector.load %arg8[%c0_19, %c0_20, %c0_21] : memref<1x1x1xf32, #tpu.memory_space<vmem>>, vector<1x1x1xf32>
      %c0_22 = arith.constant 0 : index
      %c0_23 = arith.constant 0 : index
      %c0_24 = arith.constant 0 : index
      %26 = vector.load %arg6[%c0_22, %c0_23, %c0_24] : memref<1x1x1xf32, #tpu.memory_space<vmem>>, vector<1x1x1xf32>
      %27 = vector.broadcast %26 : vector<1x1x1xf32> to vector<1x8x128xf32>
      %28 = arith.subf %0, %27 : vector<1x8x128xf32>
      %29 = arith.mulf %28, %3 : vector<1x8x128xf32>
      %30 = math.absf %29 : vector<1x8x128xf32>
      %cst = arith.constant dense<0.000000e+00> : vector<1xf32>
      %31 = vector.multi_reduction <add>, %30, %cst [1, 2] : vector<1x8x128xf32> to vector<1xf32>
      %32 = vector.shape_cast %31 : vector<1xf32> to vector<1x1x1xf32>
      %33 = arith.addf %25, %32 : vector<1x1x1xf32>
      %c0_25 = arith.constant 0 : index
      %c0_26 = arith.constant 0 : index
      %c0_27 = arith.constant 0 : index
      %34 = vector.load %arg8[%c0_25, %c0_26, %c0_27] : memref<1x1x1xf32, #tpu.memory_space<vmem>>, vector<1x1x1xf32>
      tpu.vector_store %arg8[%c0_25, %c0_26, %c0_27], %33 {strides = array<i32>} : memref<1x1x1xf32, #tpu.memory_space<vmem>>, vector<1x1x1xf32>,
      %c0_28 = arith.constant 0 : index
      %c0_29 = arith.constant 0 : index
      %c0_30 = arith.constant 0 : index
      %35 = vector.load %arg9[%c0_28, %c0_29, %c0_30] : memref<1x1x1xf32, #tpu.memory_space<vmem>>, vector<1x1x1xf32>
      %c0_31 = arith.constant 0 : index
      %c0_32 = arith.constant 0 : index
      %c0_33 = arith.constant 0 : index
      %36 = vector.load %arg7[%c0_31, %c0_32, %c0_33] : memref<1x1x1xf32, #tpu.memory_space<vmem>>, vector<1x1x1xf32>
      %37 = vector.broadcast %36 : vector<1x1x1xf32> to vector<1x8x128xf32>
      %38 = arith.subf %1, %37 : vector<1x8x128xf32>
      %39 = arith.mulf %38, %3 : vector<1x8x128xf32>
      %40 = math.absf %39 : vector<1x8x128xf32>
      %cst_34 = arith.constant dense<0.000000e+00> : vector<1xf32>
      %41 = vector.multi_reduction <add>, %40, %cst_34 [1, 2] : vector<1x8x128xf32> to vector<1xf32>
      %42 = vector.shape_cast %41 : vector<1xf32> to vector<1x1x1xf32>
      %43 = arith.addf %35, %42 : vector<1x1x1xf32>
      %c0_35 = arith.constant 0 : index
      %c0_36 = arith.constant 0 : index
      %c0_37 = arith.constant 0 : index
      %44 = vector.load %arg9[%c0_35, %c0_36, %c0_37] : memref<1x1x1xf32, #tpu.memory_space<vmem>>, vector<1x1x1xf32>
      tpu.vector_store %arg9[%c0_35, %c0_36, %c0_37], %43 {strides = array<i32>} : memref<1x1x1xf32, #tpu.memory_space<vmem>>, vector<1x1x1xf32>,
    } else {
    }
    %c1_i32_16 = arith.constant 1 : i32
    %20 = arith.cmpi eq, %arg1, %c1_i32_16 : i32
    %c0_i32_17 = arith.constant 0 : i32
    %21 = arith.cmpi eq, %arg2, %c0_i32_17 : i32
    %22 = arith.andi %20, %21 : i1
    %23 = arith.extui %22 : i1 to i32
    %c0_i32_18 = arith.constant 0 : i32
    %24 = arith.cmpi ne, %23, %c0_i32_18 : i32
    scf.if %24 {
      %c0_19 = arith.constant 0 : index
      %c0_20 = arith.constant 0 : index
      %c0_21 = arith.constant 0 : index
      %25 = vector.load %arg10[%c0_19, %c0_20, %c0_21] : memref<1x1x1xf32, #tpu.memory_space<vmem>>, vector<1x1x1xf32>
      %c0_22 = arith.constant 0 : index
      %c0_23 = arith.constant 0 : index
      %c0_24 = arith.constant 0 : index
      %26 = vector.load %arg8[%c0_22, %c0_23, %c0_24] : memref<1x1x1xf32, #tpu.memory_space<vmem>>, vector<1x1x1xf32>
      %27 = arith.mulf %26, %25 : vector<1x1x1xf32>
      %cst = arith.constant 9.99999997E-7 : f32
      %28 = vector.broadcast %cst : f32 to vector<1x1x1xf32>
      %29 = arith.addf %27, %28 : vector<1x1x1xf32>
      %cst_25 = arith.constant 1.000000e+00 : f32
      %30 = vector.broadcast %cst_25 : f32 to vector<1x1x1xf32>
      %31 = arith.divf %30, %29 : vector<1x1x1xf32>
      %c0_26 = arith.constant 0 : index
      %c0_27 = arith.constant 0 : index
      %c0_28 = arith.constant 0 : index
      %32 = vector.load %arg8[%c0_26, %c0_27, %c0_28] : memref<1x1x1xf32, #tpu.memory_space<vmem>>, vector<1x1x1xf32>
      tpu.vector_store %arg8[%c0_26, %c0_27, %c0_28], %31 {strides = array<i32>} : memref<1x1x1xf32, #tpu.memory_space<vmem>>, vector<1x1x1xf32>,
      %c0_29 = arith.constant 0 : index
      %c0_30 = arith.constant 0 : index
      %c0_31 = arith.constant 0 : index
      %33 = vector.load %arg9[%c0_29, %c0_30, %c0_31] : memref<1x1x1xf32, #tpu.memory_space<vmem>>, vector<1x1x1xf32>
      %34 = arith.mulf %33, %25 : vector<1x1x1xf32>
      %cst_32 = arith.constant 9.99999997E-7 : f32
      %35 = vector.broadcast %cst_32 : f32 to vector<1x1x1xf32>
      %36 = arith.addf %34, %35 : vector<1x1x1xf32>
      %cst_33 = arith.constant 1.000000e+00 : f32
      %37 = vector.broadcast %cst_33 : f32 to vector<1x1x1xf32>
      %38 = arith.divf %37, %36 : vector<1x1x1xf32>
      %c0_34 = arith.constant 0 : index
      %c0_35 = arith.constant 0 : index
      %c0_36 = arith.constant 0 : index
      %39 = vector.load %arg9[%c0_34, %c0_35, %c0_36] : memref<1x1x1xf32, #tpu.memory_space<vmem>>, vector<1x1x1xf32>
      tpu.vector_store %arg9[%c0_34, %c0_35, %c0_36], %38 {strides = array<i32>} : memref<1x1x1xf32, #tpu.memory_space<vmem>>, vector<1x1x1xf32>,
    } else {
    }
    return
  }
  func.func @transform_0(%arg0: i32, %arg1: i32, %arg2: i32) -> (i32, i32, i32) {
    %c0_i32 = arith.constant 0 : i32
    %c0_i32_0 = arith.constant 0 : i32
    return %arg0, %arg2, %c0_i32 : i32, i32, i32
  }
  func.func @transform_1(%arg0: i32, %arg1: i32, %arg2: i32) -> (i32, i32, i32) {
    %c0_i32 = arith.constant 0 : i32
    %c0_i32_0 = arith.constant 0 : i32
    return %arg0, %arg2, %c0_i32 : i32, i32, i32
  }
  func.func @transform_2(%arg0: i32, %arg1: i32, %arg2: i32) -> (i32, i32, i32) {
    %c0_i32 = arith.constant 0 : i32
    %c0_i32_0 = arith.constant 0 : i32
    return %arg0, %arg2, %c0_i32 : i32, i32, i32
  }
  func.func @transform_3(%arg0: i32, %arg1: i32, %arg2: i32) -> (i32, i32, i32) {
    %c0_i32 = arith.constant 0 : i32
    %c0_i32_0 = arith.constant 0 : i32
    %c0_i32_1 = arith.constant 0 : i32
    return %arg0, %c0_i32, %c0_i32_0 : i32, i32, i32
  }
  func.func @transform_4(%arg0: i32, %arg1: i32, %arg2: i32) -> (i32, i32, i32) {
    %c0_i32 = arith.constant 0 : i32
    %c0_i32_0 = arith.constant 0 : i32
    %c0_i32_1 = arith.constant 0 : i32
    return %arg0, %c0_i32, %c0_i32_0 : i32, i32, i32
  }
  func.func @transform_5(%arg0: i32, %arg1: i32, %arg2: i32) -> (i32, i32, i32) {
    %c0_i32 = arith.constant 0 : i32
    %c0_i32_0 = arith.constant 0 : i32
    %c0_i32_1 = arith.constant 0 : i32
    return %arg0, %c0_i32, %c0_i32_0 : i32, i32, i32
  }
  func.func @transform_6(%arg0: i32, %arg1: i32, %arg2: i32) -> (i32, i32, i32) {
    %c0_i32 = arith.constant 0 : i32
    %c0_i32_0 = arith.constant 0 : i32
    %c0_i32_1 = arith.constant 0 : i32
    return %arg0, %c0_i32, %c0_i32_0 : i32, i32, i32
  }
}

</mosaic_0001>

<llo_original>
// kernel: tpu_custom_call.1
$region0: #{tpu_custom_call.1}
  #allocation0 [shape = 'u32[]', space=smem, size = 0x4, offset = 0x4, fixed_abs, tag = 'smem constant byte address 0x4 - core index']
  #allocation1 [shape = 'u32[144,128]{1,0:T(1,128)}', space=vmem, size = 0x12000, scoped, tag = 'internal scratch']
  #allocation2 [shape = 'f32[1,1,1]{2,1,0:T(1,128)}', space=vmem, size = 0x200, scoped, tag = 'scratch operand']
  %s0 = inlined_call_operand.hbm [shape: f32[2,8,128], index: 0, kind: input, shape index: {}]
  %s1 = inlined_call_operand.hbm [shape: f32[2,8,128], index: 1, kind: input, shape index: {}]
  %s2 = inlined_call_operand.hbm [shape: bf16[2,8,128], index: 2, kind: input, shape index: {}]
  %s3 = inlined_call_operand.vmem [shape: f32[2,1,1], index: 3, kind: output, shape index: {0}]
  %s4 = inlined_call_operand.vmem [shape: f32[2,1,1], index: 4, kind: output, shape index: {1}]
  %s5 = inlined_call_operand.vmem [shape: f32[2,1,1], index: 5, kind: output, shape index: {2}]
  %s6 = inlined_call_operand.vmem [shape: f32[2,1,1], index: 6, kind: output, shape index: {3}]
  %7 = xla_tuple %s3, %s4, %s5, %s6
  %s8 = sld [smem:[#allocation0]]
  $region101: #{tpu_custom_call.1} parent=0
    _
  %s10 = ssub.s32 1, %s8
  %s11 = scalar_select 0, %s10, %s8
  $region1: #{tpu_custom_call.1} parent=0
    #allocation3 [shape = 'u8[8192]{0}', space=vmem, size = 0x2000, scoped, tag = 'input window, operand 0']
    #allocation4 [shape = 's32[2]{0}', space=sflag, size = 0x8, scoped, tag = 'scoped memory for tpu_custom_call.1']
    #allocation5 [shape = 'u8[8192]{0}', space=vmem, size = 0x2000, scoped, tag = 'input window, operand 1']
    #allocation6 [shape = 's32[2]{0}', space=sflag, size = 0x8, scoped, tag = 'scoped memory for tpu_custom_call.1']
    #allocation7 [shape = 'u8[4096]{0}', space=vmem, size = 0x1000, scoped, tag = 'input window, operand 2']
    %12 = vsyncpa [#allocation4], 0
    %s13 = scalar_lea.sflag [#allocation4], 1
    %14 = vsyncpa %s13, 0
    %15 = vsyncpa [#allocation6], 0
    %s16 = scalar_lea.sflag [#allocation6], 1
    %17 = vsyncpa %s16, 0
    loop: start=0, step=1, limit=6
    $region2: #{tpu_custom_call.1} parent=1 // loop_pre_header
      _
    $region3: #{tpu_custom_call.1} parent=1 // loop_header
      %s19 = sphi 0, %s23
      %p20 = scmp.ge.s32.totalorder %s19, 6
      %s26 = sphi 0, %s45
      %s27 = sphi 0, %s41
      %s28 = sphi 0, %s37
      %s29 = sphi 0, %s26
      %s30 = sphi 0, %s27
      %s31 = sphi 0, %s28
      %s32 = sphi 0, %s29
      %s33 = sphi 0, %s30
      %s34 = sphi 0, %s31
      %s50 = sphi 0, %s52
      %s53 = sphi 0, %s50
      %s54 = sphi 0, %s53
      %s70 = sphi 0, %s54
      %s78 = sphi 0, %s80
      %s81 = sphi 0, %s78
      %s82 = sphi 0, %s81
      %s98 = sphi 0, %s82
      %s106 = sphi 0, %s108
      %s109 = sphi 0, %s106
      %s110 = sphi 0, %s109
      %s126 = sphi 0, %s110
      %s132 = sphi 0, %s134
      %s135 = sphi 0, %s132
      %s136 = sphi 0, %s135
      %s152 = sphi 0, %s136
      %s158 = sphi 0, %s160
      %s161 = sphi 0, %s158
      %s162 = sphi 0, %s161
      %s178 = sphi 0, %s162
      %s184 = sphi 0, %s186
      %s187 = sphi 0, %s184
      %s188 = sphi 0, %s187
      %s204 = sphi 0, %s188
      %s210 = sphi 0, %s212
      %s213 = sphi 0, %s210
      %s214 = sphi 0, %s213
      %s230 = sphi 0, %s214
    $region4: #{tpu_custom_call.1} parent=1 // loop_header_branch
      %22 = sbr.rel (%p20) target = $region8
    $region5: #{tpu_custom_call.1} parent=1 // loop_body
      %s24 = ssub.s32 %s19, 1
      %s25 = ssub.s32 %s19, 2
      %s35 = sadd.s32 1, %s28
      %p36 = scmp.ge.s32.totalorder %s35, 1
      %s37 = scalar_select %p36, 0, %s35
      %s38 = sadd.s32 1, %s27
      %s39 = scalar_select %p36, %s38, %s27
      %p40 = scmp.ge.s32.totalorder %s39, 2
      %s41 = scalar_select %p40, 0, %s39
      %s42 = sadd.s32 1, %s26
      %s43 = scalar_select %p40, %s42, %s26
      %p44 = scmp.ge.s32.totalorder %s43, 2
      %s45 = scalar_select %p44, 0, %s43
      %s46 = ssub.s32 %s26, %s45
      %s47 = ssub.s32 %s28, %s37
      %s48 = sor.u32 %s46, %s47
      %p49 = scmp.eq.s32.totalorder %s48, 0
      %s51 = sadd.s32 %s50, 1
      %s52 = scalar_select %p49, %s50, %s51
      %p55 = pneg %p49
      %p56 = scmp.eq.s32.totalorder %s19, 3
      %p57 = por %p55, %p56
      %p58 = scmp.ne.s32.totalorder %s50, %s53
      %p59 = scmp.eq.s32.totalorder %s19, 0
      %p60 = por %p58, %p59
      %p61 = scmp.ne.s32.totalorder %s50, %s53
      %p62 = scmp.eq.s32.totalorder %s24, 3
      %p63 = por %p61, %p62
      %p64 = scmp.ne.s32.totalorder %s53, %s54
      %p65 = scmp.eq.s32.totalorder %s24, 0
      %p66 = por %p64, %p65
      %p67 = scmp.ne.s32.totalorder %s53, %s54
      %p68 = scmp.eq.s32.totalorder %s25, 3
      %p69 = por %p67, %p68
      %p71 = scmp.ne.s32.totalorder %s54, %s70
      %p72 = scmp.eq.s32.totalorder %s25, 0
      %p73 = por %p71, %p72
      %s74 = ssub.s32 %s26, %s45
      %s75 = ssub.s32 %s28, %s37
      %s76 = sor.u32 %s74, %s75
      %p77 = scmp.eq.s32.totalorder %s76, 0
      %s79 = sadd.s32 %s78, 1
      %s80 = scalar_select %p77, %s78, %s79
      %p83 = pneg %p77
      %p84 = scmp.eq.s32.totalorder %s19, 3
      %p85 = por %p83, %p84
      %p86 = scmp.ne.s32.totalorder %s78, %s81
      %p87 = scmp.eq.s32.totalorder %s19, 0
      %p88 = por %p86, %p87
      %p89 = scmp.ne.s32.totalorder %s78, %s81
      %p90 = scmp.eq.s32.totalorder %s24, 3
      %p91 = por %p89, %p90
      %p92 = scmp.ne.s32.totalorder %s81, %s82
      %p93 = scmp.eq.s32.totalorder %s24, 0
      %p94 = por %p92, %p93
      %p95 = scmp.ne.s32.totalorder %s81, %s82
      %p96 = scmp.eq.s32.totalorder %s25, 3
      %p97 = por %p95, %p96
      %p99 = scmp.ne.s32.totalorder %s82, %s98
      %p100 = scmp.eq.s32.totalorder %s25, 0
      %p101 = por %p99, %p100
      %s102 = ssub.s32 %s26, %s45
      %s103 = ssub.s32 %s28, %s37
      %s104 = sor.u32 %s102, %s103
      %p105 = scmp.eq.s32.totalorder %s104, 0
      %s107 = sadd.s32 %s106, 1
      %s108 = scalar_select %p105, %s106, %s107
      %p111 = pneg %p105
      %p112 = scmp.eq.s32.totalorder %s19, 3
      %p113 = por %p111, %p112
      %p114 = scmp.ne.s32.totalorder %s106, %s109
      %p115 = scmp.eq.s32.totalorder %s19, 0
      %p116 = por %p114, %p115
      %p117 = scmp.ne.s32.totalorder %s106, %s109
      %p118 = scmp.eq.s32.totalorder %s24, 3
      %p119 = por %p117, %p118
      %p120 = scmp.ne.s32.totalorder %s109, %s110
      %p121 = scmp.eq.s32.totalorder %s24, 0
      %p122 = por %p120, %p121
      %p123 = scmp.ne.s32.totalorder %s109, %s110
      %p124 = scmp.eq.s32.totalorder %s25, 3
      %p125 = por %p123, %p124
      %p127 = scmp.ne.s32.totalorder %s110, %s126
      %p128 = scmp.eq.s32.totalorder %s25, 0
      %p129 = por %p127, %p128
      %s130 = ssub.s32 %s26, %s45
      %p131 = scmp.eq.s32.totalorder %s130, 0
      %s133 = sadd.s32 %s132, 1
      %s134 = scalar_select %p131, %s132, %s133
      %p137 = pneg %p131
      %p138 = scmp.eq.s32.totalorder %s19, 3
      %p139 = por %p137, %p138
      %p140 = scmp.ne.s32.totalorder %s132, %s135
      %p141 = scmp.eq.s32.totalorder %s19, 0
      %p142 = por %p140, %p141
      %p143 = scmp.ne.s32.totalorder %s132, %s135
      %p144 = scmp.eq.s32.totalorder %s24, 3
      %p145 = por %p143, %p144
      %p146 = scmp.ne.s32.totalorder %s135, %s136
      %p147 = scmp.eq.s32.totalorder %s24, 0
      %p148 = por %p146, %p147
      %p149 = scmp.ne.s32.totalorder %s135, %s136
      %p150 = scmp.eq.s32.totalorder %s25, 3
      %p151 = por %p149, %p150
      %p153 = scmp.ne.s32.totalorder %s136, %s152
      %p154 = scmp.eq.s32.totalorder %s25, 0
      %p155 = por %p153, %p154
      %s156 = ssub.s32 %s26, %s45
      %p157 = scmp.eq.s32.totalorder %s156, 0
      %s159 = sadd.s32 %s158, 1
      %s160 = scalar_select %p157, %s158, %s159
      %p163 = pneg %p157
      %p164 = scmp.eq.s32.totalorder %s19, 3
      %p165 = por %p163, %p164
      %p166 = scmp.ne.s32.totalorder %s158, %s161
      %p167 = scmp.eq.s32.totalorder %s19, 0
      %p168 = por %p166, %p167
      %p169 = scmp.ne.s32.totalorder %s158, %s161
      %p170 = scmp.eq.s32.totalorder %s24, 3
      %p171 = por %p169, %p170
      %p172 = scmp.ne.s32.totalorder %s161, %s162
      %p173 = scmp.eq.s32.totalorder %s24, 0
      %p174 = por %p172, %p173
      %p175 = scmp.ne.s32.totalorder %s161, %s162
      %p176 = scmp.eq.s32.totalorder %s25, 3
      %p177 = por %p175, %p176
      %p179 = scmp.ne.s32.totalorder %s162, %s178
      %p180 = scmp.eq.s32.totalorder %s25, 0
      %p181 = por %p179, %p180
      %s182 = ssub.s32 %s26, %s45
      %p183 = scmp.eq.s32.totalorder %s182, 0
      %s185 = sadd.s32 %s184, 1
      %s186 = scalar_select %p183, %s184, %s185
      %p189 = pneg %p183
      %p190 = scmp.eq.s32.totalorder %s19, 3
      %p191 = por %p189, %p190
      %p192 = scmp.ne.s32.totalorder %s184, %s187
      %p193 = scmp.eq.s32.totalorder %s19, 0
      %p194 = por %p192, %p193
      %p195 = scmp.ne.s32.totalorder %s184, %s187
      %p196 = scmp.eq.s32.totalorder %s24, 3
      %p197 = por %p195, %p196
      %p198 = scmp.ne.s32.totalorder %s187, %s188
      %p199 = scmp.eq.s32.totalorder %s24, 0
      %p200 = por %p198, %p199
      %p201 = scmp.ne.s32.totalorder %s187, %s188
      %p202 = scmp.eq.s32.totalorder %s25, 3
      %p203 = por %p201, %p202
      %p205 = scmp.ne.s32.totalorder %s188, %s204
      %p206 = scmp.eq.s32.totalorder %s25, 0
      %p207 = por %p205, %p206
      %s208 = ssub.s32 %s26, %s45
      %p209 = scmp.eq.s32.totalorder %s208, 0
      %s211 = sadd.s32 %s210, 1
      %s212 = scalar_select %p209, %s210, %s211
      %p215 = pneg %p209
      %p216 = scmp.eq.s32.totalorder %s19, 3
      %p217 = por %p215, %p216
      %p218 = scmp.ne.s32.totalorder %s210, %s213
      %p219 = scmp.eq.s32.totalorder %s19, 0
      %p220 = por %p218, %p219
      %p221 = scmp.ne.s32.totalorder %s210, %s213
      %p222 = scmp.eq.s32.totalorder %s24, 3
      %p223 = por %p221, %p222
      %p224 = scmp.ne.s32.totalorder %s213, %s214
      %p225 = scmp.eq.s32.totalorder %s24, 0
      %p226 = por %p224, %p225
      %p227 = scmp.ne.s32.totalorder %s213, %s214
      %p228 = scmp.eq.s32.totalorder %s25, 3
      %p229 = por %p227, %p228
      %p231 = scmp.ne.s32.totalorder %s214, %s230
      %p232 = scmp.eq.s32.totalorder %s25, 0
      %p233 = por %p231, %p232
      %p234 = scmp.le.s32.totalorder 1, %s19
      %p235 = scmp.lt.s32.totalorder %s19, 5
      %p236 = pnand %p234, %p235
      %p237 = pneg %p236
      // Predicated region
      $region9: #{tpu_custom_call.1} parent=5 // pred_check
        _
      $region10: #{tpu_custom_call.1} parent=5 // pred_check_branch
        %239 = sbr.rel (%p236) target = $region12
      $region11: #{tpu_custom_call.1} parent=5 // pred_region
        %s240 = ssub.s32 %s19, 1
      $region12: #{tpu_custom_call.1} parent=5 // pred_fallthru
        _
      %p241 = scmp.lt.s32.totalorder %s19, 4
      // Predicated region
      $region13: #{tpu_custom_call.1} parent=5 // pred_check
        %p242 = pneg %p241
      $region14: #{tpu_custom_call.1} parent=5 // pred_check_branch
        %244 = sbr.rel (%p242) target = $region16
      $region15: #{tpu_custom_call.1} parent=5 // pred_region
        // Predicated region
        $region17: #{tpu_custom_call.1} parent=15 // pred_check
          %p245 = pneg %p60
        $region18: #{tpu_custom_call.1} parent=15 // pred_check_branch
          %247 = sbr.rel (%p245) target = $region20
        $region19: #{tpu_custom_call.1} parent=15 // pred_region
          %s248 = sand.u32 %s50, 1
          %s249 = scalar_lea.sflag [#allocation4], %s248
          %s250 = sand.u32 %s50, 1
          %s251 = smul.addr %s250, 8
          %s252 = scalar_lea.vmem [#allocation3], %s251
          %s254 = ssub.s32 128, 128
          %255 = vsyncadd %s249, %s254
          %s256 = sadd.s32 %s28, %s26
          %s257 = smul.addr %s256, 128
          %s258 = scalar_lea.hbm %s0, %s257
          %s260 = sshll.u32 %s252, 4
          %s261 = int_to_ptr.vmem [resolvable:$true] %s260
          %263 = dma.hbm_to_vmem [thread:$0]  %s258, 128, %s261, %s249
        $region20: #{tpu_custom_call.1} parent=15 // pred_fallthru
          _
        // Predicated region
        $region21: #{tpu_custom_call.1} parent=15 // pred_check
          %p264 = pneg %p88
        $region22: #{tpu_custom_call.1} parent=15 // pred_check_branch
          %266 = sbr.rel (%p264) target = $region24
        $region23: #{tpu_custom_call.1} parent=15 // pred_region
          %s267 = sand.u32 %s19, 1
          %s268 = scalar_lea.sflag [#allocation6], %s267
          %s269 = sand.u32 %s78, 1
          %s270 = smul.addr %s269, 8
          %s271 = scalar_lea.vmem [#allocation5], %s270
          %s273 = ssub.s32 128, 128
          %274 = vsyncadd %s268, %s273
          %s275 = sadd.s32 %s28, %s26
          %s276 = smul.addr %s275, 128
          %s277 = scalar_lea.hbm %s1, %s276
          %s279 = sshll.u32 %s271, 4
          %s280 = int_to_ptr.vmem [resolvable:$true] %s279
          %282 = dma.hbm_to_vmem [thread:$0]  %s277, 128, %s280, %s268
        $region24: #{tpu_custom_call.1} parent=15 // pred_fallthru
          _
        // Predicated region
        $region25: #{tpu_custom_call.1} parent=15 // pred_check
          %p283 = pneg %p116
        $region26: #{tpu_custom_call.1} parent=15 // pred_check_branch
          %285 = sbr.rel (%p283) target = $region28
        $region27: #{tpu_custom_call.1} parent=15 // pred_region
          %s286 = sand.u32 %s19, 1
          %s287 = scalar_lea.sflag [#allocation6], %s286
          %s288 = sand.u32 %s106, 1
          %s289 = smul.addr %s288, 4
          %s290 = scalar_lea.vmem [#allocation7], %s289
          %s292 = ssub.s32 64, 64
          %293 = vsyncadd %s287, %s292
          %s294 = sadd.s32 %s28, %s26
          %s295 = smul.addr %s294, 64
          %s296 = scalar_lea.hbm %s2, %s295
          %s298 = sshll.u32 %s290, 4
          %s299 = int_to_ptr.vmem [resolvable:$true] %s298
          %301 = dma.hbm_to_vmem [thread:$0]  %s296, 64, %s299, %s287
        $region28: #{tpu_custom_call.1} parent=15 // pred_fallthru
          _
      $region16: #{tpu_custom_call.1} parent=5 // pred_fallthru
        _
      %p302 = scmp.le.s32.totalorder 1, %s19
      %p303 = scmp.lt.s32.totalorder %s19, 5
      %p304 = pnand %p302, %p303
      %p305 = pneg %p304
      // Predicated region
      $region29: #{tpu_custom_call.1} parent=5 // pred_check
        _
      $region30: #{tpu_custom_call.1} parent=5 // pred_check_branch
        %307 = sbr.rel (%p304) target = $region32
      $region31: #{tpu_custom_call.1} parent=5 // pred_region
        %s308 = ssub.s32 %s19, 1
        %s309 = sand.u32 %s53, 1
        %s310 = scalar_lea.sflag [#allocation4], %s309
        %s311 = sand.u32 %s53, 1
        %s312 = smul.addr %s311, 8
        %s313 = scalar_lea.vmem [#allocation3], %s312
        // Predicated region
        $region33: #{tpu_custom_call.1} parent=31 // pred_check
          %p314 = pneg %p66
        $region34: #{tpu_custom_call.1} parent=31 // pred_check_branch
          %316 = sbr.rel (%p314) target = $region36
        $region35: #{tpu_custom_call.1} parent=31 // pred_region
          %317 = dma.done %s310, 128
        $region36: #{tpu_custom_call.1} parent=31 // pred_fallthru
          _
        %s318 = sand.u32 %s24, 1
        %s319 = scalar_lea.sflag [#allocation6], %s318
        %s320 = sand.u32 %s81, 1
        %s321 = smul.addr %s320, 8
        %s322 = scalar_lea.vmem [#allocation5], %s321
        // Predicated region
        $region37: #{tpu_custom_call.1} parent=31 // pred_check
          %p323 = pneg %p94
        $region38: #{tpu_custom_call.1} parent=31 // pred_check_branch
          %325 = sbr.rel (%p323) target = $region40
        $region39: #{tpu_custom_call.1} parent=31 // pred_region
          %326 = dma.done %s319, 128
        $region40: #{tpu_custom_call.1} parent=31 // pred_fallthru
          _
        %s327 = sand.u32 %s24, 1
        %s328 = scalar_lea.sflag [#allocation6], %s327
        %s329 = sand.u32 %s109, 1
        %s330 = smul.addr %s329, 4
        %s331 = scalar_lea.vmem [#allocation7], %s330
        // Predicated region
        $region41: #{tpu_custom_call.1} parent=31 // pred_check
          %p332 = pneg %p122
        $region42: #{tpu_custom_call.1} parent=31 // pred_check_branch
          %334 = sbr.rel (%p332) target = $region44
        $region43: #{tpu_custom_call.1} parent=31 // pred_region
          %335 = dma.done %s328, 64
        $region44: #{tpu_custom_call.1} parent=31 // pred_fallthru
          _
        %s336 = sand.u32 %s53, 1
        %s337 = scalar_lea.sflag [#allocation4], %s336
        %s338 = sand.u32 %s53, 1
        %s339 = smul.addr %s338, 8
        %s340 = scalar_lea.vmem [#allocation3], %s339
        %p341 = pneg %p66
        %p342 = pneg %p63
        %s343 = sand.u32 %s24, 1
        %s344 = scalar_lea.sflag [#allocation6], %s343
        %s345 = sand.u32 %s81, 1
        %s346 = smul.addr %s345, 8
        %s347 = scalar_lea.vmem [#allocation5], %s346
        %p348 = pneg %p94
        %p349 = pneg %p91
        %s350 = sand.u32 %s24, 1
        %s351 = scalar_lea.sflag [#allocation6], %s350
        %s352 = sand.u32 %s109, 1
        %s353 = smul.addr %s352, 4
        %s354 = scalar_lea.vmem [#allocation7], %s353
        %p355 = pneg %p122
        %p356 = pneg %p119
        %p357 = pneg %p148
        %p358 = pneg %p145
        %p359 = scmp.lt.s32.totalorder %s29, 1
        %s360 = scalar_select %p359, %s29, 1
        %s361 = scalar_lea.vmem %s3, %s360
        %p362 = pneg %p174
        %p363 = pneg %p171
        %p364 = scmp.lt.s32.totalorder %s29, 1
        %s365 = scalar_select %p364, %s29, 1
        %s366 = scalar_lea.vmem %s4, %s365
        %p367 = pneg %p200
        %p368 = pneg %p197
        %p369 = scmp.lt.s32.totalorder %s29, 1
        %s370 = scalar_select %p369, %s29, 1
        %s371 = scalar_lea.vmem %s5, %s370
        %p372 = pneg %p226
        %p373 = pneg %p223
        %p374 = scmp.lt.s32.totalorder %s29, 1
        %s375 = scalar_select %p374, %s29, 1
        %s376 = scalar_lea.vmem %s6, %s375
        %p377 = scmp.lt.s32.totalorder %s29, 1
        %s378 = scalar_select %p377, %s29, 1
        %s379 = scalar_lea.vmem %s3, %s378
        %p380 = scmp.lt.s32.totalorder %s29, 1
        %s381 = scalar_select %p380, %s29, 1
        %s382 = scalar_lea.vmem %s4, %s381
        %p383 = scmp.lt.s32.totalorder %s29, 1
        %s384 = scalar_select %p383, %s29, 1
        %s385 = scalar_lea.vmem %s5, %s384
        %p386 = scmp.lt.s32.totalorder %s29, 1
        %s387 = scalar_select %p386, %s29, 1
        %s388 = scalar_lea.vmem %s6, %s387
        %v389 = vld [vmem:[%s313] sm:$0xff]
        %v390 = vld [vmem:[%s322] sm:$0xff]
        %v391 = vld [vmem:[%s331] sm:$0xf]
        %v392 = vunpack.c.l.bf16 %v391
        %p393 = scmp.eq.s32.totalorder %s30, 0
        %p394 = scmp.eq.s32.totalorder %s31, 0
        %p395 = pnand %p393, %p394
        %p396 = pneg %p395
        // Predicated region
        $region45: #{tpu_custom_call.1} parent=31 // pred_check
          _
        $region46: #{tpu_custom_call.1} parent=31 // pred_check_branch
          %398 = sbr.rel (%p395) target = $region48
        $region47: #{tpu_custom_call.1} parent=31 // pred_region
          %vm399 = vcmask 0
          %400 = vst.msk [vmem:[#allocation2] sm:$0x1] %vm399, 0.0
          %401 = vst.msk [vmem:[%s379] sm:$0x1] %vm399, 0.0
          %402 = vst.msk [vmem:[%s382] sm:$0x1] %vm399, 0.0
        $region48: #{tpu_custom_call.1} parent=31 // pred_fallthru
          _
        // Predicated region
        $region49: #{tpu_custom_call.1} parent=31 // pred_check
          %p403 = pneg %p393
        $region50: #{tpu_custom_call.1} parent=31 // pred_check_branch
          %405 = sbr.rel (%p403) target = $region52
        $region51: #{tpu_custom_call.1} parent=31 // pred_region
          %v406 = vld [vmem:[#allocation2] sm:$0x1]
          %407 = vadd.xlane.f32.xlu0 %v392
          %v408 = vpop.xlane.xlu0 %407
          %v409 = vrot.slane %v408, 4
          %v410 = vadd.f32 %v408, %v409
          %v411 = vrot.slane %v410, 2
          %v412 = vadd.f32 %v410, %v411
          %v413 = vrot.slane %v412, 1
          %v414 = vadd.f32 %v412, %v413
          %v415 = vadd.f32 %v406, %v414
          %vm416 = vcmask 0
          %417 = vst.msk [vmem:[#allocation2] sm:$0x1] %vm416, %v415
          %v418 = vld [vmem:[%s379] sm:$0x1]
          %v419 = vmul.f32 %v389, %v392
          %420 = vadd.xlane.f32.xlu0 %v419
          %v421 = vpop.xlane.xlu0 %420
          %v422 = vrot.slane %v421, 4
          %v423 = vadd.f32 %v421, %v422
          %v424 = vrot.slane %v423, 2
          %v425 = vadd.f32 %v423, %v424
          %v426 = vrot.slane %v425, 1
          %v427 = vadd.f32 %v425, %v426
          %v428 = vadd.f32 %v418, %v427
          %429 = vst.msk [vmem:[%s379] sm:$0x1] %vm416, %v428
          %v430 = vld [vmem:[%s382] sm:$0x1]
          %v431 = vmul.f32 %v390, %v392
          %432 = vadd.xlane.f32.xlu0 %v431
          %v433 = vpop.xlane.xlu0 %432
          %v434 = vrot.slane %v433, 4
          %v435 = vadd.f32 %v433, %v434
          %v436 = vrot.slane %v435, 2
          %v437 = vadd.f32 %v435, %v436
          %v438 = vrot.slane %v437, 1
          %v439 = vadd.f32 %v437, %v438
          %v440 = vadd.f32 %v430, %v439
          %441 = vst.msk [vmem:[%s382] sm:$0x1] %vm416, %v440
        $region52: #{tpu_custom_call.1} parent=31 // pred_fallthru
          _
        // Predicated region
        $region53: #{tpu_custom_call.1} parent=31 // pred_check
          _
        $region54: #{tpu_custom_call.1} parent=31 // pred_check_branch
          %443 = sbr.rel (%p395) target = $region56
        $region55: #{tpu_custom_call.1} parent=31 // pred_region
          %v444 = vld [vmem:[#allocation2] sm:$0x1]
          %vm445 = vcmp.eq.f32.partialorder %v444, 0.0
          %v446 = vsel %vm445, 1e-06, %v444
          %v447 = vrcp.pop %v446
          %v448 = vmul.f32 1.0, %v447
          %vm449 = vcmask 0
          %450 = vst.msk [vmem:[#allocation2] sm:$0x1] %vm449, %v448
          %v451 = vld [vmem:[%s379] sm:$0x1]
          %v452 = vmul.f32 %v451, %v448
          %453 = vst.msk [vmem:[%s379] sm:$0x1] %vm449, %v452
          %v454 = vld [vmem:[%s382] sm:$0x1]
          %v455 = vmul.f32 %v454, %v448
          %456 = vst.msk [vmem:[%s382] sm:$0x1] %vm449, %v455
          %457 = vst.msk [vmem:[%s385] sm:$0x1] %vm449, 0.0
          %458 = vst.msk [vmem:[%s388] sm:$0x1] %vm449, 0.0
        $region56: #{tpu_custom_call.1} parent=31 // pred_fallthru
          _
        %p459 = scmp.eq.s32.totalorder %s30, 1
        // Predicated region
        $region57: #{tpu_custom_call.1} parent=31 // pred_check
          %p460 = pneg %p459
        $region58: #{tpu_custom_call.1} parent=31 // pred_check_branch
          %462 = sbr.rel (%p460) target = $region60
        $region59: #{tpu_custom_call.1} parent=31 // pred_region
          %v463 = vld [vmem:[%s385] sm:$0x1]
          %v464 = vld [vmem:[%s379] sm:$0x1]
          %v466 = vlaneseq
          %v467 = vshrl.u32 %v466, 7
          %v468 = vsub.s32 0, %v467
          %v469 = vrot.slane %v464, %v468
          %470 = vset.pattern.permute.xlu0 0
          %471 = vperm.xlu0 %470, %v469
          %v472 = vpop.permute.xlu0 %471
          %v474 = vsub.f32 %v389, %v472
          %v475 = vmul.f32 %v474, %v392
          %v476 = vand.u32 2147483647, %v475
          %477 = vadd.xlane.f32.xlu0 %v476
          %v478 = vpop.xlane.xlu0 %477
          %v479 = vrot.slane %v478, 4
          %v480 = vadd.f32 %v478, %v479
          %v481 = vrot.slane %v480, 2
          %v482 = vadd.f32 %v480, %v481
          %v483 = vrot.slane %v482, 1
          %v484 = vadd.f32 %v482, %v483
          %v485 = vadd.f32 %v463, %v484
          %vm486 = vcmask 0
          %487 = vst.msk [vmem:[%s385] sm:$0x1] %vm486, %v485
          %v488 = vld [vmem:[%s388] sm:$0x1]
          %v489 = vld [vmem:[%s382] sm:$0x1]
          %v491 = vlaneseq
          %v492 = vshrl.u32 %v491, 7
          %v493 = vsub.s32 0, %v492
          %v494 = vrot.slane %v489, %v493
          %495 = vset.pattern.permute.xlu0 0
          %496 = vperm.xlu0 %495, %v494
          %v497 = vpop.permute.xlu0 %496
          %v499 = vsub.f32 %v390, %v497
          %v500 = vmul.f32 %v499, %v392
          %v501 = vand.u32 2147483647, %v500
          %502 = vadd.xlane.f32.xlu0 %v501
          %v503 = vpop.xlane.xlu0 %502
          %v504 = vrot.slane %v503, 4
          %v505 = vadd.f32 %v503, %v504
          %v506 = vrot.slane %v505, 2
          %v507 = vadd.f32 %v505, %v506
          %v508 = vrot.slane %v507, 1
          %v509 = vadd.f32 %v507, %v508
          %v510 = vadd.f32 %v488, %v509
          %511 = vst.msk [vmem:[%s388] sm:$0x1] %vm486, %v510
        $region60: #{tpu_custom_call.1} parent=31 // pred_fallthru
          _
        %p512 = pnand %p459, %p394
        %p513 = pneg %p512
        // Predicated region
        $region61: #{tpu_custom_call.1} parent=31 // pred_check
          _
        $region62: #{tpu_custom_call.1} parent=31 // pred_check_branch
          %515 = sbr.rel (%p512) target = $region64
        $region63: #{tpu_custom_call.1} parent=31 // pred_region
          %v516 = vld [vmem:[#allocation2] sm:$0x1]
          %v517 = vld [vmem:[%s385] sm:$0x1]
          %v518 = vmul.f32 %v517, %v516
          %v519 = vadd.f32 %v518, 1e-06
          %v520 = vrcp.pop %v519
          %v521 = vmul.f32 1.0, %v520
          %vm522 = vcmask 0
          %523 = vst.msk [vmem:[%s385] sm:$0x1] %vm522, %v521
          %v524 = vld [vmem:[%s388] sm:$0x1]
          %v525 = vmul.f32 %v524, %v516
          %v526 = vadd.f32 %v525, 1e-06
          %v527 = vrcp.pop %v526
          %v528 = vmul.f32 1.0, %v527
          %529 = vst.msk [vmem:[%s388] sm:$0x1] %vm522, %v528
        $region64: #{tpu_custom_call.1} parent=31 // pred_fallthru
          _
        %p530 = scmp.lt.s32.totalorder %s29, 1
        %s531 = scalar_select %p530, %s29, 1
        %s532 = scalar_lea.vmem %s3, %s531
        %p533 = scmp.lt.s32.totalorder %s29, 1
        %s534 = scalar_select %p533, %s29, 1
        %s535 = scalar_lea.vmem %s4, %s534
        %p536 = scmp.lt.s32.totalorder %s29, 1
        %s537 = scalar_select %p536, %s29, 1
        %s538 = scalar_lea.vmem %s5, %s537
        %p539 = scmp.lt.s32.totalorder %s29, 1
        %s540 = scalar_select %p539, %s29, 1
        %s541 = scalar_lea.vmem %s6, %s540
        // Predicated region
        $region65: #{tpu_custom_call.1} parent=31 // pred_check
          %p542 = pneg %p145
        $region66: #{tpu_custom_call.1} parent=31 // pred_check_branch
          %544 = sbr.rel (%p542) target = $region68
        $region67: #{tpu_custom_call.1} parent=31 // pred_region
          _
        $region68: #{tpu_custom_call.1} parent=31 // pred_fallthru
          _
        // Predicated region
        $region69: #{tpu_custom_call.1} parent=31 // pred_check
          %p545 = pneg %p171
        $region70: #{tpu_custom_call.1} parent=31 // pred_check_branch
          %547 = sbr.rel (%p545) target = $region72
        $region71: #{tpu_custom_call.1} parent=31 // pred_region
          _
        $region72: #{tpu_custom_call.1} parent=31 // pred_fallthru
          _
        // Predicated region
        $region73: #{tpu_custom_call.1} parent=31 // pred_check
          %p548 = pneg %p197
        $region74: #{tpu_custom_call.1} parent=31 // pred_check_branch
          %550 = sbr.rel (%p548) target = $region76
        $region75: #{tpu_custom_call.1} parent=31 // pred_region
          _
        $region76: #{tpu_custom_call.1} parent=31 // pred_fallthru
          _
        // Predicated region
        $region77: #{tpu_custom_call.1} parent=31 // pred_check
          %p551 = pneg %p223
        $region78: #{tpu_custom_call.1} parent=31 // pred_check_branch
          %553 = sbr.rel (%p551) target = $region80
        $region79: #{tpu_custom_call.1} parent=31 // pred_region
          _
        $region80: #{tpu_custom_call.1} parent=31 // pred_fallthru
          _
      $region32: #{tpu_custom_call.1} parent=5 // pred_fallthru
        _
      %p554 = scmp.le.s32.totalorder 2, %s19
      // Predicated region
      $region81: #{tpu_custom_call.1} parent=5 // pred_check
        %p555 = pneg %p554
      $region82: #{tpu_custom_call.1} parent=5 // pred_check_branch
        %557 = sbr.rel (%p555) target = $region84
      $region83: #{tpu_custom_call.1} parent=5 // pred_region
        %s558 = ssub.s32 %s19, 2
        // Predicated region
        $region85: #{tpu_custom_call.1} parent=83 // pred_check
          %p559 = pneg %p151
        $region86: #{tpu_custom_call.1} parent=83 // pred_check_branch
          %561 = sbr.rel (%p559) target = $region88
        $region87: #{tpu_custom_call.1} parent=83 // pred_region
          %p562 = scmp.lt.s32.totalorder %s32, 1
          %s563 = scalar_select %p562, %s32, 1
          %s564 = scalar_lea.vmem %s3, %s563
        $region88: #{tpu_custom_call.1} parent=83 // pred_fallthru
          _
        // Predicated region
        $region89: #{tpu_custom_call.1} parent=83 // pred_check
          %p565 = pneg %p177
        $region90: #{tpu_custom_call.1} parent=83 // pred_check_branch
          %567 = sbr.rel (%p565) target = $region92
        $region91: #{tpu_custom_call.1} parent=83 // pred_region
          %p568 = scmp.lt.s32.totalorder %s32, 1
          %s569 = scalar_select %p568, %s32, 1
          %s570 = scalar_lea.vmem %s4, %s569
        $region92: #{tpu_custom_call.1} parent=83 // pred_fallthru
          _
        // Predicated region
        $region93: #{tpu_custom_call.1} parent=83 // pred_check
          %p571 = pneg %p203
        $region94: #{tpu_custom_call.1} parent=83 // pred_check_branch
          %573 = sbr.rel (%p571) target = $region96
        $region95: #{tpu_custom_call.1} parent=83 // pred_region
          %p574 = scmp.lt.s32.totalorder %s32, 1
          %s575 = scalar_select %p574, %s32, 1
          %s576 = scalar_lea.vmem %s5, %s575
        $region96: #{tpu_custom_call.1} parent=83 // pred_fallthru
          _
        // Predicated region
        $region97: #{tpu_custom_call.1} parent=83 // pred_check
          %p577 = pneg %p229
        $region98: #{tpu_custom_call.1} parent=83 // pred_check_branch
          %579 = sbr.rel (%p577) target = $region100
        $region99: #{tpu_custom_call.1} parent=83 // pred_region
          %p580 = scmp.lt.s32.totalorder %s32, 1
          %s581 = scalar_select %p580, %s32, 1
          %s582 = scalar_lea.vmem %s6, %s581
        $region100: #{tpu_custom_call.1} parent=83 // pred_fallthru
          _
      $region84: #{tpu_custom_call.1} parent=5 // pred_fallthru
        _
    $region6: #{tpu_custom_call.1} parent=1 // loop_footer
      %s23 = sadd.s32 1, %s19
    $region7: #{tpu_custom_call.1} parent=1 // loop_footer_branch
      %18 = sbr.rel target = $region3
    $region8: #{tpu_custom_call.1} parent=1 // loop_exit
      _
    %583 = vsyncpa [#allocation4], 1
    %s584 = scalar_lea.sflag [#allocation4], 1
    %585 = vsyncpa %s584, 1
    %586 = vsyncpa [#allocation6], 1
    %s587 = scalar_lea.sflag [#allocation6], 1
    %588 = vsyncpa %s587, 1

</llo_original>
